<compile_context>
chip_gen: v5e
topology: v5e:2x2
jax: 0.10.0
libtpu: 0.0.40
codegen_flags: <defaults>
</compile_context>

<pallas_src>
import functools

import numpy as np
import jax
import jax.numpy as jnp
from jax.experimental import pallas as pl
from jax.experimental.pallas import tpu as pltpu


def _roll_kernel(perm_ref, x_ref, o_ref, *, sh, sw):
    # perm_ref (SMEM scalar-prefetch) is only consumed by the index_map.
    del perm_ref
    x = x_ref[...]                      # (bb, H, W) lane-dense block
    if sh:
        x = jnp.roll(x, sh, axis=1)     # sublane-axis roll
    if sw:
        x = jnp.roll(x, sw, axis=2)     # lane-axis roll
    o_ref[...] = x


def _pick_batch(num_planes, plane_bytes, budget=1 << 20):
    """Largest divisor of num_planes whose block fits `budget` (~1 MiB, safe
    for v7x's smaller VMEM with double buffering), keeping >=2 grid steps
    when possible so both v7x TensorCores get work."""
    best = 1
    for d in range(1, num_planes + 1):
        if num_planes % d:
            continue
        if d * plane_bytes > budget:
            continue
        if num_planes > 1 and num_planes // d < 2:
            continue
        best = d
    return best


def roll(x, shifts, dims=None):
    """torch.roll(x, shifts, dims) as a Pallas TPU kernel."""
    x = jnp.asarray(x)
    if x.ndim == 0 or x.size == 0:
        return x

    orig_shape = x.shape
    nd = x.ndim

    if dims is None:
        # torch semantics: flatten, roll, restore the original shape.
        if isinstance(shifts, (tuple, list)):
            assert len(shifts) == 1, "dims must be given for multiple shifts"
            shift = int(shifts[0])
        else:
            shift = int(shifts)
        xb = x.reshape(1, 1, x.size)
        lead_shape = ()
        lead_shifts = ()
        sh, sw = 0, shift % x.size
    else:
        shifts_t = (tuple(int(s) for s in shifts)
                    if isinstance(shifts, (tuple, list)) else (int(shifts),))
        dims_t = (tuple(int(d) for d in dims)
                  if isinstance(dims, (tuple, list)) else (int(dims),))
        assert len(shifts_t) == len(dims_t), "shifts and dims length mismatch"

        per_axis = [0] * nd
        for s, d in zip(shifts_t, dims_t):
            per_axis[d % nd] += s
        per_axis = [s % n if n else 0 for s, n in zip(per_axis, orig_shape)]

        if nd == 1:
            xb = x.reshape(1, 1, orig_shape[0])
            lead_shape, lead_shifts = (), ()
            sh, sw = 0, per_axis[0]
        elif nd == 2:
            xb = x.reshape(1, orig_shape[0], orig_shape[1])
            lead_shape, lead_shifts = (), ()
            sh, sw = per_axis[0], per_axis[1]
        else:
            lead_shape = orig_shape[:-2]
            B_lead = int(np.prod(lead_shape))
            xb = x.reshape(B_lead, orig_shape[-2], orig_shape[-1])
            lead_shifts = tuple(per_axis[:-2])
            sh, sw = per_axis[-2], per_axis[-1]

    B, H, W = xb.shape
    plane_bytes = H * W * x.dtype.itemsize
    # TODO(synk): if a single (H, W) plane exceeds the VMEM budget, the
    # trailing axes would additionally need tiling; not required here.

    if any(lead_shifts):
        # Leading-axis rolls = permutation of planes, resolved purely by the
        # input index_map via a scalar-prefetched source-block table.
        bb = 1
        flat_ids = np.arange(B, dtype=np.int32).reshape(lead_shape)
        perm = np.roll(flat_ids, lead_shifts,
                       axis=tuple(range(len(lead_shifts)))).reshape(-1)
    else:
        # No leading shifts: batch planes per grid step (identity block map).
        bb = _pick_batch(B, plane_bytes)
        perm = np.arange(B // bb, dtype=np.int32)
    nblk = B // bb

    kernel = functools.partial(_roll_kernel, sh=sh, sw=sw)
    out = pl.pallas_call(
        kernel,
        out_shape=jax.ShapeDtypeStruct((B, H, W), x.dtype),
        grid_spec=pltpu.PrefetchScalarGridSpec(
            num_scalar_prefetch=1,
            grid=(nblk,),
            in_specs=[pl.BlockSpec((bb, H, W),
                                   lambda i, perm_ref: (perm_ref[i], 0, 0))],
            out_specs=pl.BlockSpec((bb, H, W),
                                   lambda i, perm_ref: (i, 0, 0)),
        ),
        compiler_params=pltpu.CompilerParams(
            dimension_semantics=("parallel",)),
        cost_estimate=pl.CostEstimate(
            flops=0,
            transcendentals=0,
            bytes_accessed=2 * x.size * x.dtype.itemsize),
    )(jnp.asarray(perm), xb)

    return out.reshape(orig_shape)


class RollPallas:
    """Mirror of the PyTorch Roll module: forward(*args, **kwargs) = torch.roll."""

    def __call__(self, *args, **kwargs):
        # TODO(synk): traced/dynamic shift values would need a dynamic-rotate
        # kernel; shifts are treated as static Python ints (matching usage).
        return roll(*args, **kwargs)


if __name__ == "__main__":
    key = jax.random.PRNGKey(0)
    x = jax.random.normal(key, (2, 4, 16, 16), dtype=jnp.float32)

    mod = RollPallas()

    cases = [
        dict(shifts=(3, -5), dims=(2, 3)),                # trailing-dim roll
        dict(shifts=(1, 2), dims=(0, 1)),                 # leading-dim roll (DMA perm)
        dict(shifts=(1, 2, 3, -4), dims=(0, 1, 2, 3)),    # combined
        dict(shifts=5, dims=None),                        # flattened roll
    ]

    for c in cases:
        out = jax.block_until_ready(mod(x, c["shifts"], c["dims"]))
        ref = jnp.roll(x, c["shifts"], axis=c["dims"])
        assert out.shape == x.shape, (out.shape, c)
        assert out.dtype == x.dtype
        assert jnp.array_equal(out, ref), f"mismatch vs reference for {c}"

    print("KERNEL_OK")
</pallas_src>

<mosaic_0001>
module attributes {stable_mosaic.version = 11 : i64} {
  func.func @_roll_kernel(%arg0: i32, %arg1: memref<2xi32, #tpu.memory_space<smem>>, %arg2: memref<4x16x16xf32, #tpu.memory_space<vmem>>, %arg3: memref<4x16x16xf32, #tpu.memory_space<vmem>>) attributes {dimension_semantics = [#tpu.dimension_semantics<parallel>], iteration_bounds = array<i64: 2>, scalar_prefetch = 1 : i64, scratch_operands = 0 : i64, tpu.core_type = #tpu.core_type<tc>, window_params = [{transform_indices = @transform_0, window_bounds = array<i64: 4, 16, 16>}, {transform_indices = @transform_1, window_bounds = array<i64: 4, 16, 16>}]} {
    %c0 = arith.constant 0 : index
    %c0_0 = arith.constant 0 : index
    %c0_1 = arith.constant 0 : index
    %0 = vector.load %arg2[%c0, %c0_0, %c0_1] : memref<4x16x16xf32, #tpu.memory_space<vmem>>, vector<4x16x16xf32>
    %1 = vector.extract_strided_slice %0 {offsets = [0, 13, 0], sizes = [4, 3, 16], strides = [1, 1, 1]} : vector<4x16x16xf32> to vector<4x3x16xf32>
    %2 = vector.extract_strided_slice %0 {offsets = [0, 0, 0], sizes = [4, 13, 16], strides = [1, 1, 1]} : vector<4x16x16xf32> to vector<4x13x16xf32>
    %3 = tpu.concatenate %1, %2 in 1 : vector<4x3x16xf32>, vector<4x13x16xf32> -> vector<4x16x16xf32>
    %4 = vector.extract_strided_slice %3 {offsets = [0, 0, 5], sizes = [4, 16, 11], strides = [1, 1, 1]} : vector<4x16x16xf32> to vector<4x16x11xf32>
    %5 = vector.extract_strided_slice %3 {offsets = [0, 0, 0], sizes = [4, 16, 5], strides = [1, 1, 1]} : vector<4x16x16xf32> to vector<4x16x5xf32>
    %6 = tpu.concatenate %4, %5 in 2 : vector<4x16x11xf32>, vector<4x16x5xf32> -> vector<4x16x16xf32>
    %c0_2 = arith.constant 0 : index
    %c0_3 = arith.constant 0 : index
    %c0_4 = arith.constant 0 : index
    %7 = vector.load %arg3[%c0_2, %c0_3, %c0_4] : memref<4x16x16xf32, #tpu.memory_space<vmem>>, vector<4x16x16xf32>
    tpu.vector_store %arg3[%c0_2, %c0_3, %c0_4], %6 {strides = array<i32>} : memref<4x16x16xf32, #tpu.memory_space<vmem>>, vector<4x16x16xf32>,
    return
  }
  func.func @transform_0(%arg0: i32, %arg1: memref<2xi32, #tpu.memory_space<smem>>) -> (i32, i32, i32) {
    %0 = arith.index_cast %arg0 : i32 to index
    %1 = memref.load %arg1[%0] : memref<2xi32, #tpu.memory_space<smem>>
    %c0_i32 = arith.constant 0 : i32
    %c0_i32_0 = arith.constant 0 : i32
    %c0_i32_1 = arith.constant 0 : i32
    return %1, %c0_i32, %c0_i32_0 : i32, i32, i32
  }
  func.func @transform_1(%arg0: i32, %arg1: memref<2xi32, #tpu.memory_space<smem>>) -> (i32, i32, i32) {
    %c0_i32 = arith.constant 0 : i32
    %c0_i32_0 = arith.constant 0 : i32
    %c0_i32_1 = arith.constant 0 : i32
    return %arg0, %c0_i32, %c0_i32_0 : i32, i32, i32
  }
}

</mosaic_0001>

<llo_original>
// kernel: tpu_custom_call.1
$region0: #{tpu_custom_call.1}
  #allocation0 [shape = 'u32[]', space=smem, size = 0x4, offset = 0x4, fixed_abs, tag = 'smem constant byte address 0x4 - core index']
  #allocation1 [shape = 'u32[72,128]{1,0:T(1,128)}', space=vmem, size = 0x9000, scoped, tag = 'internal scratch']
  #allocation2 [shape = 's32[1]{0}', space=sflag, size = 0x4, scoped, tag = 'scoped memory for tpu_custom_call.1']
  #allocation3 [shape = 'u8[512]{0}', space=smem, size = 0x200, scoped, tag = 'prefetched SMEM operand 0']
  %s0 = inlined_call_operand.hbm [shape: s32[2], index: 0, kind: input, shape index: {}]
  %s1 = inlined_call_operand.hbm [shape: f32[8,16,16], index: 1, kind: input, shape index: {}]
  %s2 = inlined_call_operand.hbm [shape: f32[8,16,16], index: 2, kind: output, shape index: {}]
  %s3 = sld [smem:[#allocation0]]
  $region41: #{tpu_custom_call.1} parent=0
    _
  %s5 = ssub.s32 1, %s3
  %s6 = scalar_select 0, %s5, %s3
  %s8 = sshll.u32 %s0, 4
  %s9 = int_to_ptr.hbm [resolvable:$true] %s8
  %11 = dma.hbm_to_smem %s9, 16, [#allocation3], [#allocation2]
  %13 = dma.done [#allocation2], 16
  %14 = sfence
  $region1: #{tpu_custom_call.1} parent=0
    #allocation4 [shape = 'u8[65536]{0}', space=vmem, size = 0x10000, scoped, tag = 'input window, operand 1']
    #allocation5 [shape = 's32[2]{0}', space=sflag, size = 0x8, scoped, tag = 'scoped memory for tpu_custom_call.1']
    #allocation6 [shape = 's32[2]{0}', space=sflag, size = 0x8, scoped, tag = 'scoped memory for tpu_custom_call.1']
    #allocation7 [shape = 'u8[65536]{0}', space=vmem, size = 0x10000, scoped, tag = 'output window, operand 0']
    %15 = vsyncpa [#allocation5], 0
    %s16 = scalar_lea.sflag [#allocation5], 1
    %17 = vsyncpa %s16, 0
    %18 = vsyncpa [#allocation6], 0
    %s19 = scalar_lea.sflag [#allocation6], 1
    %20 = vsyncpa %s19, 0
    loop: start=0, step=1, limit=4
    $region2: #{tpu_custom_call.1} parent=1 // loop_pre_header
      _
    $region3: #{tpu_custom_call.1} parent=1 // loop_header
      %s22 = sphi 0, %s26
      %p23 = scmp.ge.s32.totalorder %s22, 4
      %s34 = sphi 0, %s36
      %s37 = sphi 0, %s34
      %s38 = sphi 0, %s37
      %s54 = sphi 0, %s38
      %s60 = sphi 0, %s62
      %s63 = sphi 0, %s60
      %s64 = sphi 0, %s63
      %s80 = sphi 0, %s64
    $region4: #{tpu_custom_call.1} parent=1 // loop_header_branch
      %25 = sbr.rel (%p23) target = $region8
    $region5: #{tpu_custom_call.1} parent=1 // loop_body
      %s27 = ssub.s32 %s22, 1
      %s28 = ssub.s32 %s22, 2
      %s29 = sadd.s32 %s22, 1
      %s30 = sld [smem:[#allocation3 + %s22]]
      %s31 = sld [smem:[#allocation3 + %s29]]
      %s32 = ssub.s32 %s30, %s31
      %p33 = scmp.eq.s32.totalorder %s32, 0
      %s35 = sadd.s32 %s34, 1
      %s36 = scalar_select %p33, %s34, %s35
      %p39 = pneg %p33
      %p40 = scmp.eq.s32.totalorder %s22, 1
      %p41 = por %p39, %p40
      %p42 = scmp.ne.s32.totalorder %s34, %s37
      %p43 = scmp.eq.s32.totalorder %s22, 0
      %p44 = por %p42, %p43
      %p45 = scmp.ne.s32.totalorder %s34, %s37
      %p46 = scmp.eq.s32.totalorder %s27, 1
      %p47 = por %p45, %p46
      %p48 = scmp.ne.s32.totalorder %s37, %s38
      %p49 = scmp.eq.s32.totalorder %s27, 0
      %p50 = por %p48, %p49
      %p51 = scmp.ne.s32.totalorder %s37, %s38
      %p52 = scmp.eq.s32.totalorder %s28, 1
      %p53 = por %p51, %p52
      %p55 = scmp.ne.s32.totalorder %s38, %s54
      %p56 = scmp.eq.s32.totalorder %s28, 0
      %p57 = por %p55, %p56
      %s58 = ssub.s32 %s22, %s29
      %p59 = scmp.eq.s32.totalorder %s58, 0
      %s61 = sadd.s32 %s60, 1
      %s62 = scalar_select %p59, %s60, %s61
      %p65 = pneg %p59
      %p66 = scmp.eq.s32.totalorder %s22, 1
      %p67 = por %p65, %p66
      %p68 = scmp.ne.s32.totalorder %s60, %s63
      %p69 = scmp.eq.s32.totalorder %s22, 0
      %p70 = por %p68, %p69
      %p71 = scmp.ne.s32.totalorder %s60, %s63
      %p72 = scmp.eq.s32.totalorder %s27, 1
      %p73 = por %p71, %p72
      %p74 = scmp.ne.s32.totalorder %s63, %s64
      %p75 = scmp.eq.s32.totalorder %s27, 0
      %p76 = por %p74, %p75
      %p77 = scmp.ne.s32.totalorder %s63, %s64
      %p78 = scmp.eq.s32.totalorder %s28, 1
      %p79 = por %p77, %p78
      %p81 = scmp.ne.s32.totalorder %s64, %s80
      %p82 = scmp.eq.s32.totalorder %s28, 0
      %p83 = por %p81, %p82
      %p84 = scmp.le.s32.totalorder 1, %s22
      %p85 = scmp.lt.s32.totalorder %s22, 3
      %p86 = pnand %p84, %p85
      %p87 = pneg %p86
      // Predicated region
      $region9: #{tpu_custom_call.1} parent=5 // pred_check
        _
      $region10: #{tpu_custom_call.1} parent=5 // pred_check_branch
        %89 = sbr.rel (%p86) target = $region12
      $region11: #{tpu_custom_call.1} parent=5 // pred_region
        %s90 = ssub.s32 %s22, 1
      $region12: #{tpu_custom_call.1} parent=5 // pred_fallthru
        _
      %p91 = scmp.lt.s32.totalorder %s22, 2
      // Predicated region
      $region13: #{tpu_custom_call.1} parent=5 // pred_check
        %p92 = pneg %p91
      $region14: #{tpu_custom_call.1} parent=5 // pred_check_branch
        %94 = sbr.rel (%p92) target = $region16
      $region15: #{tpu_custom_call.1} parent=5 // pred_region
        // Predicated region
        $region17: #{tpu_custom_call.1} parent=15 // pred_check
          %p95 = pneg %p44
        $region18: #{tpu_custom_call.1} parent=15 // pred_check_branch
          %97 = sbr.rel (%p95) target = $region20
        $region19: #{tpu_custom_call.1} parent=15 // pred_region
          %s98 = sand.u32 %s34, 1
          %s99 = scalar_lea.sflag [#allocation5], %s98
          %s100 = sand.u32 %s34, 1
          %s101 = smul.addr %s100, 64
          %s102 = scalar_lea.vmem [#allocation4], %s101
          %s103 = sld [smem:[#allocation3 + %s22]]
          %s104 = smul.u32 4, %s103
          %106 = vsyncadd %s99, 0
          %s107 = smul.addr %s104, 2
          %s108 = smul.addr %s107, 8
          %s109 = scalar_lea.hbm %s1, %s108
          %s110 = sshll.u32 %s109, 4
          %s111 = int_to_ptr.hbm [resolvable:$true] %s110
          %s112 = sshll.u32 %s102, 4
          %s113 = int_to_ptr.vmem [resolvable:$true] %s112
          %118 = dma.hbm_to_vmem [thread:$0]  %s111, 1024, %s113, %s99, 128, 128, 8
        $region20: #{tpu_custom_call.1} parent=15 // pred_fallthru
          _
      $region16: #{tpu_custom_call.1} parent=5 // pred_fallthru
        _
      %p119 = scmp.le.s32.totalorder 1, %s22
      %p120 = scmp.lt.s32.totalorder %s22, 3
      %p121 = pnand %p119, %p120
      %p122 = pneg %p121
      // Predicated region
      $region21: #{tpu_custom_call.1} parent=5 // pred_check
        _
      $region22: #{tpu_custom_call.1} parent=5 // pred_check_branch
        %124 = sbr.rel (%p121) target = $region24
      $region23: #{tpu_custom_call.1} parent=5 // pred_region
        %s125 = ssub.s32 %s22, 1
        %s126 = sand.u32 %s37, 1
        %s127 = scalar_lea.sflag [#allocation5], %s126
        %s128 = sand.u32 %s37, 1
        %s129 = smul.addr %s128, 64
        %s130 = scalar_lea.vmem [#allocation4], %s129
        // Predicated region
        $region25: #{tpu_custom_call.1} parent=23 // pred_check
          %p131 = pneg %p50
        $region26: #{tpu_custom_call.1} parent=23 // pred_check_branch
          %133 = sbr.rel (%p131) target = $region28
        $region27: #{tpu_custom_call.1} parent=23 // pred_region
          %135 = dma.done %s127, 1024
        $region28: #{tpu_custom_call.1} parent=23 // pred_fallthru
          _
        %s136 = sand.u32 %s37, 1
        %s137 = scalar_lea.sflag [#allocation5], %s136
        %s138 = sand.u32 %s37, 1
        %s139 = smul.addr %s138, 64
        %s140 = scalar_lea.vmem [#allocation4], %s139
        %p141 = pneg %p50
        %p142 = pneg %p47
        %p143 = pneg %p76
        %p144 = pneg %p73
        %s145 = sand.u32 %s63, 1
        %s146 = scalar_lea.sflag [#allocation6], %s145
        %s147 = sand.u32 %s63, 1
        %s148 = smul.addr %s147, 64
        %s149 = scalar_lea.vmem [#allocation7], %s148
        %s150 = sld [smem:[#allocation3 + %s27]]
        %s151 = smul.u32 4, %s150
        %s152 = smul.u32 4, %s27
        %v153 = vld [vmem:[%s130] sm:$0xff]
        %v154 = vld [vmem:[%s130 + $0x8] sm:$0xff]
        %v155 = vld [vmem:[%s130 + $0x10] sm:$0xff]
        %v156 = vld [vmem:[%s130 + $0x18] sm:$0xff]
        %v157 = vld [vmem:[%s130 + $0x20] sm:$0xff]
        %v158 = vld [vmem:[%s130 + $0x28] sm:$0xff]
        %v159 = vld [vmem:[%s130 + $0x30] sm:$0xff]
        %v160 = vld [vmem:[%s130 + $0x38] sm:$0xff]
        %v165 = vrot.slane %v154, 5
        %v166 = vrot.slane %v156, 5
        %v167 = vrot.slane %v158, 5
        %v168 = vrot.slane %v160, 5
        %vm177 = vcmask 1042432
        %v178 = vrot.slane %v153, 5
        %v179 = vsel %vm177, %v178, %v165
        %v180 = vrot.slane %v155, 5
        %v181 = vsel %vm177, %v180, %v166
        %v182 = vrot.slane %v157, 5
        %v183 = vsel %vm177, %v182, %v167
        %v184 = vrot.slane %v159, 5
        %v185 = vsel %vm177, %v184, %v168
        %v190 = vsel %vm177, %v165, %v178
        %v191 = vsel %vm177, %v166, %v180
        %v192 = vsel %vm177, %v167, %v182
        %v193 = vsel %vm177, %v168, %v184
        %198 = vrot.lane.b32.xlu0 %v190, 123
        %v199 = vpop.permute.xlu0 %198
        %200 = vrot.lane.b32.xlu0 %v179, 123
        %v201 = vpop.permute.xlu0 %200
        %202 = vrot.lane.b32.xlu0 %v191, 123
        %v203 = vpop.permute.xlu0 %202
        %204 = vrot.lane.b32.xlu0 %v181, 123
        %v205 = vpop.permute.xlu0 %204
        %206 = vrot.lane.b32.xlu0 %v192, 123
        %v207 = vpop.permute.xlu0 %206
        %208 = vrot.lane.b32.xlu0 %v183, 123
        %v209 = vpop.permute.xlu0 %208
        %210 = vrot.lane.b32.xlu0 %v193, 123
        %v211 = vpop.permute.xlu0 %210
        %212 = vrot.lane.b32.xlu0 %v185, 123
        %v213 = vpop.permute.xlu0 %212
        %222 = vrot.lane.b32.xlu0 %v190, 11
        %v223 = vpop.permute.xlu0 %222
        %224 = vrot.lane.b32.xlu0 %v179, 11
        %v225 = vpop.permute.xlu0 %224
        %226 = vrot.lane.b32.xlu0 %v191, 11
        %v227 = vpop.permute.xlu0 %226
        %228 = vrot.lane.b32.xlu0 %v181, 11
        %v229 = vpop.permute.xlu0 %228
        %230 = vrot.lane.b32.xlu0 %v192, 11
        %v231 = vpop.permute.xlu0 %230
        %232 = vrot.lane.b32.xlu0 %v183, 11
        %v233 = vpop.permute.xlu0 %232
        %234 = vrot.lane.b32.xlu0 %v193, 11
        %v235 = vpop.permute.xlu0 %234
        %236 = vrot.lane.b32.xlu0 %v185, 11
        %v237 = vpop.permute.xlu0 %236
        %vm246 = vcmask 89088
        %v247 = vsel %vm246, %v199, %v223
        %v248 = vsel %vm246, %v201, %v225
        %v249 = vsel %vm246, %v203, %v227
        %v250 = vsel %vm246, %v205, %v229
        %v251 = vsel %vm246, %v207, %v231
        %v252 = vsel %vm246, %v209, %v233
        %v253 = vsel %vm246, %v211, %v235
        %v254 = vsel %vm246, %v213, %v237
        %vm255 = vcmask 130048
        %256 = vst.msk [vmem:[%s149] sm:$0xff] %vm255, %v247
        %257 = vst.msk [vmem:[%s149 + $0x8] sm:$0xff] %vm255, %v248
        %258 = vst.msk [vmem:[%s149 + $0x10] sm:$0xff] %vm255, %v249
        %259 = vst.msk [vmem:[%s149 + $0x18] sm:$0xff] %vm255, %v250
        %260 = vst.msk [vmem:[%s149 + $0x20] sm:$0xff] %vm255, %v251
        %261 = vst.msk [vmem:[%s149 + $0x28] sm:$0xff] %vm255, %v252
        %262 = vst.msk [vmem:[%s149 + $0x30] sm:$0xff] %vm255, %v253
        %263 = vst.msk [vmem:[%s149 + $0x38] sm:$0xff] %vm255, %v254
        %s264 = sand.u32 %s63, 1
        %s265 = scalar_lea.sflag [#allocation6], %s264
        %s266 = sand.u32 %s63, 1
        %s267 = smul.addr %s266, 64
        %s268 = scalar_lea.vmem [#allocation7], %s267
        // Predicated region
        $region29: #{tpu_custom_call.1} parent=23 // pred_check
          %p269 = pneg %p73
        $region30: #{tpu_custom_call.1} parent=23 // pred_check_branch
          %271 = sbr.rel (%p269) target = $region32
        $region31: #{tpu_custom_call.1} parent=23 // pred_region
          %s272 = smul.u32 4, %s27
          %274 = vsyncadd %s265, 0
          %s275 = smul.addr %s272, 2
          %s276 = smul.addr %s275, 8
          %s277 = scalar_lea.hbm %s2, %s276
          %s278 = sshll.u32 %s268, 4
          %s279 = int_to_ptr.vmem [resolvable:$true] %s278
          %s280 = sshll.u32 %s277, 4
          %s281 = int_to_ptr.hbm [resolvable:$true] %s280
          %286 = dma.vmem_to_hbm [thread:$0]  %s279, 1024, %s281, %s265, 128, 128, 8
        $region32: #{tpu_custom_call.1} parent=23 // pred_fallthru
          _
      $region24: #{tpu_custom_call.1} parent=5 // pred_fallthru
        _
      %p287 = scmp.le.s32.totalorder 2, %s22
      // Predicated region
      $region33: #{tpu_custom_call.1} parent=5 // pred_check
        %p288 = pneg %p287
      $region34: #{tpu_custom_call.1} parent=5 // pred_check_branch
        %290 = sbr.rel (%p288) target = $region36
      $region35: #{tpu_custom_call.1} parent=5 // pred_region
        %s291 = ssub.s32 %s22, 2
        // Predicated region
        $region37: #{tpu_custom_call.1} parent=35 // pred_check
          %p292 = pneg %p79
        $region38: #{tpu_custom_call.1} parent=35 // pred_check_branch
          %294 = sbr.rel (%p292) target = $region40
        $region39: #{tpu_custom_call.1} parent=35 // pred_region
          %s295 = sand.u32 %s64, 1
          %s296 = scalar_lea.sflag [#allocation6], %s295
          %s297 = sand.u32 %s64, 1
          %s298 = smul.addr %s297, 64
          %s299 = scalar_lea.vmem [#allocation7], %s298
          %301 = dma.done %s296, 1024
        $region40: #{tpu_custom_call.1} parent=35 // pred_fallthru
          _
      $region36: #{tpu_custom_call.1} parent=5 // pred_fallthru
        _
    $region6: #{tpu_custom_call.1} parent=1 // loop_footer
      %s26 = sadd.s32 1, %s22
    $region7: #{tpu_custom_call.1} parent=1 // loop_footer_branch
      %21 = sbr.rel target = $region3
    $region8: #{tpu_custom_call.1} parent=1 // loop_exit
      _
    %302 = vsyncpa [#allocation5], 1
    %s303 = scalar_lea.sflag [#allocation5], 1
    %304 = vsyncpa %s303, 1
    %305 = vsyncpa [#allocation6], 1
    %s306 = scalar_lea.sflag [#allocation6], 1
    %307 = vsyncpa %s306, 1

</llo_original>
